<compile_context>
chip_gen: v5e
topology: v5e:2x2
jax: 0.10.0
libtpu: 0.0.40
codegen_flags: <defaults>
</compile_context>

<pallas_src>
import math

import jax
import jax.numpy as jnp
from jax.experimental import pallas as pl
from jax.experimental.pallas import tpu as pltpu


_GELU_C = math.sqrt(2.0 / math.pi)


def _gelu_tanh(x):
    # Matches the module's custom GELU (tanh approximation):
    # 0.5 * x * (1 + tanh(sqrt(2/pi) * (x + 0.044715 * x**3)))
    return 0.5 * x * (1.0 + jnp.tanh(_GELU_C * (x + 0.044715 * x * x * x)))


def _make_kernel(tn, hw_total):
    inv_hw = 1.0 / float(hw_total)

    def kernel(x_ref, w1t_ref, w2t_ref, o_ref, sum_ref, max_ref):
        # x_ref  : (TN, C, TILE_HW) f32 -- TN batch rows, one spatial tile
        # w1t_ref: (C, C_hid)       f32 -- fc1 weight, pre-transposed
        # w2t_ref: (C_hid, C)       f32 -- fc2 weight, pre-transposed
        # o_ref  : (TN, C)          f32 -- sigmoid channel attention
        # sum_ref/max_ref: (TN, C)  f32 -- running spatial sum / running max
        hw_step = pl.program_id(1)

        @pl.when(hw_step == 0)
        def _init():
            sum_ref[...] = jnp.zeros_like(sum_ref)
            max_ref[...] = jnp.full_like(max_ref, -jnp.inf)

        x = x_ref[...]                                        # (TN, C, TILE_HW)
        sum_ref[...] = sum_ref[...] + jnp.sum(x, axis=-1)     # (TN, C)
        max_ref[...] = jnp.maximum(max_ref[...], jnp.max(x, axis=-1))

        @pl.when(hw_step == pl.num_programs(1) - 1)
        def _finalize():
            avg = sum_ref[...] * inv_hw                       # (TN, C)
            # Fused MLP over both pooling branches: one dot->gelu->dot chain.
            pooled = jnp.concatenate([avg, max_ref[...]], axis=0)   # (2*TN, C)
            h = jnp.dot(pooled, w1t_ref[...],
                        preferred_element_type=jnp.float32)         # (2*TN, C_hid)
            g = _gelu_tanh(h)
            r = jnp.dot(g, w2t_ref[...],
                        preferred_element_type=jnp.float32)         # (2*TN, C)
            # avg_out + max_out + avg_out2 == 2 * avg_branch + max_branch
            out = 2.0 * r[:tn] + r[tn:]
            o_ref[...] = jax.nn.sigmoid(out)

    return kernel


def _choose_hw_tile(tn, c, hw, budget_bytes=8 << 20):
    """Largest HW tile that (a) is a multiple of 128 dividing HW (or HW
    itself) and (b) keeps one f32 x-block within `budget_bytes`, so the
    double-buffered stream stays well inside v7x's 64 MiB VMEM."""
    bytes_per_lane = tn * c * 4
    if hw * bytes_per_lane <= budget_bytes:
        return hw
    if hw % 128 != 0:
        # TODO(synk): pad/mask ragged HW instead of falling back to one block.
        return hw
    best = 128
    t = 256
    while t * bytes_per_lane <= budget_bytes and t <= hw:
        if hw % t == 0:
            best = t
        t += 128
    return best


def channel_attention(x_nchw, w1, w2, *, tile_hw=None, tn=None):
    """x_nchw: (N, C, H, W) f32; w1: (C//16, C); w2: (C, C//16).
    Returns sigmoid channel attention of shape (N, C, 1, 1)."""
    N, C, H, W = x_nchw.shape
    C_hid = w1.shape[0]
    HW = H * W

    if tn is None:
        tn = min(N, 8)
    if tile_hw is None:
        tile_hw = _choose_hw_tile(tn, C, HW)

    n_blocks = pl.cdiv(N, tn)
    hw_blocks = pl.cdiv(HW, tile_hw)

    x_flat = x_nchw.reshape(N, C, HW)
    w1t = jnp.transpose(w1)                                   # (C, C_hid)
    w2t = jnp.transpose(w2)                                   # (C_hid, C)

    x_block_bytes = tn * C * tile_hw * 4
    vmem_limit = int(min(100 << 20, max(32 << 20, 4 * x_block_bytes)))

    out = pl.pallas_call(
        _make_kernel(tn, HW),
        out_shape=jax.ShapeDtypeStruct((N, C), jnp.float32),
        grid_spec=pltpu.PrefetchScalarGridSpec(
            num_scalar_prefetch=0,
            grid=(n_blocks, hw_blocks),
            in_specs=[
                pl.BlockSpec((tn, C, tile_hw), lambda n, h: (n, 0, h)),
                pl.BlockSpec((C, C_hid), lambda n, h: (0, 0)),
                pl.BlockSpec((C_hid, C), lambda n, h: (0, 0)),
            ],
            out_specs=pl.BlockSpec((tn, C), lambda n, h: (n, 0)),
            scratch_shapes=[
                pltpu.VMEM((tn, C), jnp.float32),   # running sum
                pltpu.VMEM((tn, C), jnp.float32),   # running max
            ],
        ),
        compiler_params=pltpu.CompilerParams(
            dimension_semantics=("parallel", "arbitrary"),
            vmem_limit_bytes=vmem_limit,
        ),
    )(x_flat, w1t, w2t)

    return out.reshape(N, C, 1, 1)


def channel_attention_ref(x_nchw, w1, w2):
    """Pure-JAX reference mirroring the PyTorch forward."""
    avg = jnp.mean(x_nchw, axis=(2, 3))                       # (N, C)
    mx = jnp.max(x_nchw, axis=(2, 3))                         # (N, C)

    def mlp(v):
        h = v @ w1.T
        return _gelu_tanh(h) @ w2.T

    out = mlp(avg) + mlp(mx) + mlp(avg)
    return jax.nn.sigmoid(out)[:, :, None, None]


if __name__ == "__main__":
    # in_planes must be >= 16 since fc1 reduces channels by //16.
    N, C, H, W = 2, 32, 16, 16
    C_hid = C // 16

    key = jax.random.PRNGKey(0)
    kx, k1, k2 = jax.random.split(key, 3)
    x = jax.random.normal(kx, (N, C, H, W), dtype=jnp.float32)
    # fc1: Conv2d(C, C//16, 1, bias=False) -> weight (C//16, C, 1, 1) squeezed.
    w1 = jax.random.normal(k1, (C_hid, C), dtype=jnp.float32) * 0.1
    # fc2: Conv2d(C//16, C, 1, bias=False) -> weight (C, C//16, 1, 1) squeezed.
    w2 = jax.random.normal(k2, (C, C_hid), dtype=jnp.float32) * 0.1

    # tile_hw=128 forces a 2-step spatial reduction so the accumulator path
    # (init / accumulate / finalize) is exercised even at this small shape.
    out = channel_attention(x, w1, w2, tile_hw=128)
    out = jax.block_until_ready(out)

    ref = channel_attention_ref(x, w1, w2)
    assert out.shape == (N, C, 1, 1)
    assert jnp.allclose(out, ref, atol=1e-5, rtol=1e-5), (
        float(jnp.max(jnp.abs(out - ref))))

    print("KERNEL_OK")
</pallas_src>

<mosaic_0001>
module attributes {stable_mosaic.version = 11 : i64} {
  func.func @kernel(%arg0: i32, %arg1: i32, %arg2: memref<2x32x128xf32, #tpu.memory_space<vmem>>, %arg3: memref<32x2xf32, #tpu.memory_space<vmem>>, %arg4: memref<2x32xf32, #tpu.memory_space<vmem>>, %arg5: memref<2x32xf32, #tpu.memory_space<vmem>>, %arg6: memref<2x32xf32, #tpu.memory_space<vmem>>, %arg7: memref<2x32xf32, #tpu.memory_space<vmem>>) attributes {dimension_semantics = [#tpu.dimension_semantics<parallel>, #tpu.dimension_semantics<arbitrary>], iteration_bounds = array<i64: 1, 2>, scalar_prefetch = 0 : i64, scratch_operands = 2 : i64, tpu.core_type = #tpu.core_type<tc>, window_params = [{transform_indices = @transform_0, window_bounds = array<i64: 2, 32, 128>}, {pipeline_mode = #tpu.pipeline_mode<synchronous>, transform_indices = @transform_1, window_bounds = array<i64: 32, 2>}, {pipeline_mode = #tpu.pipeline_mode<synchronous>, transform_indices = @transform_2, window_bounds = array<i64: 2, 32>}, {transform_indices = @transform_3, window_bounds = array<i64: 2, 32>}]} {
    %c0_i32 = arith.constant 0 : i32
    %0 = arith.cmpi eq, %arg1, %c0_i32 : i32
    %1 = arith.extui %0 : i1 to i32
    %c0_i32_0 = arith.constant 0 : i32
    %2 = arith.cmpi ne, %1, %c0_i32_0 : i32
    scf.if %2 {
      %cst_13 = arith.constant 0.000000e+00 : f32
      %15 = vector.broadcast %cst_13 : f32 to vector<2x32xf32>
      %c0_14 = arith.constant 0 : index
      %c0_15 = arith.constant 0 : index
      %16 = vector.load %arg6[%c0_14, %c0_15] : memref<2x32xf32, #tpu.memory_space<vmem>>, vector<2x32xf32>
      tpu.vector_store %arg6[%c0_14, %c0_15], %15 {strides = array<i32>} : memref<2x32xf32, #tpu.memory_space<vmem>>, vector<2x32xf32>,
      %cst_16 = arith.constant 0xFF800000 : f32
      %17 = vector.broadcast %cst_16 : f32 to vector<2x32xf32>
      %c0_17 = arith.constant 0 : index
      %c0_18 = arith.constant 0 : index
      %18 = vector.load %arg7[%c0_17, %c0_18] : memref<2x32xf32, #tpu.memory_space<vmem>>, vector<2x32xf32>
      tpu.vector_store %arg7[%c0_17, %c0_18], %17 {strides = array<i32>} : memref<2x32xf32, #tpu.memory_space<vmem>>, vector<2x32xf32>,
    } else {
    }
    %c0 = arith.constant 0 : index
    %c0_1 = arith.constant 0 : index
    %c0_2 = arith.constant 0 : index
    %3 = vector.load %arg2[%c0, %c0_1, %c0_2] : memref<2x32x128xf32, #tpu.memory_space<vmem>>, vector<2x32x128xf32>
    %c0_3 = arith.constant 0 : index
    %c0_4 = arith.constant 0 : index
    %4 = vector.load %arg6[%c0_3, %c0_4] : memref<2x32xf32, #tpu.memory_space<vmem>>, vector<2x32xf32>
    %cst = arith.constant dense<0.000000e+00> : vector<2x32xf32>
    %5 = vector.multi_reduction <add>, %3, %cst [2] : vector<2x32x128xf32> to vector<2x32xf32>
    %6 = arith.addf %4, %5 : vector<2x32xf32>
    %c0_5 = arith.constant 0 : index
    %c0_6 = arith.constant 0 : index
    %7 = vector.load %arg6[%c0_5, %c0_6] : memref<2x32xf32, #tpu.memory_space<vmem>>, vector<2x32xf32>
    tpu.vector_store %arg6[%c0_5, %c0_6], %6 {strides = array<i32>} : memref<2x32xf32, #tpu.memory_space<vmem>>, vector<2x32xf32>,
    %c0_7 = arith.constant 0 : index
    %c0_8 = arith.constant 0 : index
    %8 = vector.load %arg7[%c0_7, %c0_8] : memref<2x32xf32, #tpu.memory_space<vmem>>, vector<2x32xf32>
    %cst_9 = arith.constant dense<0xFF800000> : vector<2x32xf32>
    %9 = vector.multi_reduction <maximumf>, %3, %cst_9 [2] : vector<2x32x128xf32> to vector<2x32xf32>
    %10 = arith.maximumf %8, %9 : vector<2x32xf32>
    %c0_10 = arith.constant 0 : index
    %c0_11 = arith.constant 0 : index
    %11 = vector.load %arg7[%c0_10, %c0_11] : memref<2x32xf32, #tpu.memory_space<vmem>>, vector<2x32xf32>
    tpu.vector_store %arg7[%c0_10, %c0_11], %10 {strides = array<i32>} : memref<2x32xf32, #tpu.memory_space<vmem>>, vector<2x32xf32>,
    %c1_i32 = arith.constant 1 : i32
    %12 = arith.cmpi eq, %arg1, %c1_i32 : i32
    %13 = arith.extui %12 : i1 to i32
    %c0_i32_12 = arith.constant 0 : i32
    %14 = arith.cmpi ne, %13, %c0_i32_12 : i32
    scf.if %14 {
      %c0_13 = arith.constant 0 : index
      %c0_14 = arith.constant 0 : index
      %15 = vector.load %arg6[%c0_13, %c0_14] : memref<2x32xf32, #tpu.memory_space<vmem>>, vector<2x32xf32>
      %cst_15 = arith.constant 3.906250e-03 : f32
      %16 = vector.broadcast %cst_15 : f32 to vector<2x32xf32>
      %17 = arith.mulf %15, %16 : vector<2x32xf32>
      %c0_16 = arith.constant 0 : index
      %c0_17 = arith.constant 0 : index
      %18 = vector.load %arg7[%c0_16, %c0_17] : memref<2x32xf32, #tpu.memory_space<vmem>>, vector<2x32xf32>
      %19 = tpu.concatenate %17, %18 in 0 : vector<2x32xf32>, vector<2x32xf32> -> vector<4x32xf32>
      %c0_18 = arith.constant 0 : index
      %c0_19 = arith.constant 0 : index
      %20 = vector.load %arg3[%c0_18, %c0_19] : memref<32x2xf32, #tpu.memory_space<vmem>>, vector<32x2xf32>
      %cst_20 = arith.constant dense<0.000000e+00> : vector<4x2xf32>
      %21 = tpu.matmul %19, %20, %cst_20 {dimension_numbers = #tpu.dot_dimension_numbers<[1], [0], [0], [1], [0, 0, 1, 1], [], []>} : vector<4x32xf32>, vector<32x2xf32>, vector<4x2xf32> -> vector<4x2xf32>
      %cst_21 = arith.constant 5.000000e-01 : f32
      %22 = vector.broadcast %cst_21 : f32 to vector<4x2xf32>
      %23 = arith.mulf %22, %21 : vector<4x2xf32>
      %cst_22 = arith.constant 4.471500e-02 : f32
      %24 = vector.broadcast %cst_22 : f32 to vector<4x2xf32>
      %25 = arith.mulf %24, %21 : vector<4x2xf32>
      %26 = arith.mulf %25, %21 : vector<4x2xf32>
      %27 = arith.mulf %26, %21 : vector<4x2xf32>
      %28 = arith.addf %21, %27 : vector<4x2xf32>
      %cst_23 = arith.constant 0.797884583 : f32
      %29 = vector.broadcast %cst_23 : f32 to vector<4x2xf32>
      %30 = arith.mulf %29, %28 : vector<4x2xf32>
      %31 = math.tanh %30 : vector<4x2xf32>
      %cst_24 = arith.constant 1.000000e+00 : f32
      %32 = vector.broadcast %cst_24 : f32 to vector<4x2xf32>
      %33 = arith.addf %32, %31 : vector<4x2xf32>
      %34 = arith.mulf %23, %33 : vector<4x2xf32>
      %c0_25 = arith.constant 0 : index
      %c0_26 = arith.constant 0 : index
      %35 = vector.load %arg4[%c0_25, %c0_26] : memref<2x32xf32, #tpu.memory_space<vmem>>, vector<2x32xf32>
      %cst_27 = arith.constant dense<0.000000e+00> : vector<4x32xf32>
      %36 = tpu.matmul %34, %35, %cst_27 {dimension_numbers = #tpu.dot_dimension_numbers<[1], [0], [0], [1], [0, 0, 1, 1], [], []>} : vector<4x2xf32>, vector<2x32xf32>, vector<4x32xf32> -> vector<4x32xf32>
      %37 = vector.extract_strided_slice %36 {offsets = [0, 0], sizes = [2, 32], strides = [1, 1]} : vector<4x32xf32> to vector<2x32xf32>
      %cst_28 = arith.constant 2.000000e+00 : f32
      %38 = vector.broadcast %cst_28 : f32 to vector<2x32xf32>
      %39 = arith.mulf %38, %37 : vector<2x32xf32>
      %40 = vector.extract_strided_slice %36 {offsets = [2, 0], sizes = [2, 32], strides = [1, 1]} : vector<4x32xf32> to vector<2x32xf32>
      %41 = arith.addf %39, %40 : vector<2x32xf32>
      %42 = arith.negf %41 : vector<2x32xf32>
      %43 = math.exp %42 : vector<2x32xf32>
      %cst_29 = arith.constant 1.000000e+00 : f32
      %44 = vector.broadcast %cst_29 : f32 to vector<2x32xf32>
      %45 = arith.addf %44, %43 : vector<2x32xf32>
      %46 = arith.divf %44, %45 : vector<2x32xf32>
      %c0_30 = arith.constant 0 : index
      %c0_31 = arith.constant 0 : index
      %47 = vector.load %arg5[%c0_30, %c0_31] : memref<2x32xf32, #tpu.memory_space<vmem>>, vector<2x32xf32>
      tpu.vector_store %arg5[%c0_30, %c0_31], %46 {strides = array<i32>} : memref<2x32xf32, #tpu.memory_space<vmem>>, vector<2x32xf32>,
    } else {
    }
    return
  }
  func.func @transform_0(%arg0: i32, %arg1: i32) -> (i32, i32, i32) {
    %c0_i32 = arith.constant 0 : i32
    %c0_i32_0 = arith.constant 0 : i32
    return %arg0, %c0_i32, %arg1 : i32, i32, i32
  }
  func.func @transform_1(%arg0: i32, %arg1: i32) -> (i32, i32) {
    %c0_i32 = arith.constant 0 : i32
    %c0_i32_0 = arith.constant 0 : i32
    %c0_i32_1 = arith.constant 0 : i32
    return %c0_i32, %c0_i32_0 : i32, i32
  }
  func.func @transform_2(%arg0: i32, %arg1: i32) -> (i32, i32) {
    %c0_i32 = arith.constant 0 : i32
    %c0_i32_0 = arith.constant 0 : i32
    %c0_i32_1 = arith.constant 0 : i32
    return %c0_i32, %c0_i32_0 : i32, i32
  }
  func.func @transform_3(%arg0: i32, %arg1: i32) -> (i32, i32) {
    %c0_i32 = arith.constant 0 : i32
    %c0_i32_0 = arith.constant 0 : i32
    return %arg0, %c0_i32 : i32, i32
  }
}

</mosaic_0001>

<llo_original>
// kernel: tpu_custom_call.1
$region0: #{tpu_custom_call.1}
  #allocation0 [shape = 'u32[]', space=smem, size = 0x4, offset = 0x4, fixed_abs, tag = 'smem constant byte address 0x4 - core index']
  #allocation1 [shape = 'u32[72,128]{1,0:T(1,128)}', space=vmem, size = 0x9000, scoped, tag = 'internal scratch']
  #allocation2 [shape = 'f32[2,32]{1,0:T(2,128)}', space=vmem, size = 0x400, scoped, tag = 'scratch operand']
  #allocation3 [shape = 'f32[2,32]{1,0:T(2,128)}', space=vmem, size = 0x400, scoped, tag = 'scratch operand']
  %s0 = inlined_call_operand.hbm [shape: f32[2,32,256], index: 0, kind: input, shape index: {}]
  %s1 = inlined_call_operand.vmem [shape: f32[32,2], index: 1, kind: input, shape index: {}]
  %s2 = inlined_call_operand.vmem [shape: f32[2,32], index: 2, kind: input, shape index: {}]
  %s3 = inlined_call_operand.hbm [shape: f32[2,32], index: 3, kind: output, shape index: {}]
  %s4 = sld [smem:[#allocation0]]
  $region57: #{tpu_custom_call.1} parent=0
    _
  %s6 = ssub.s32 1, %s4
  %s7 = scalar_select 0, %s6, %s4
  $region1: #{tpu_custom_call.1} parent=0
    #allocation4 [shape = 'u8[65536]{0}', space=vmem, size = 0x10000, scoped, tag = 'input window, operand 0']
    #allocation5 [shape = 's32[2]{0}', space=sflag, size = 0x8, scoped, tag = 'scoped memory for tpu_custom_call.1']
    #allocation6 [shape = 's32[2]{0}', space=sflag, size = 0x8, scoped, tag = 'scoped memory for tpu_custom_call.1']
    #allocation7 [shape = 'u8[1024]{0}', space=vmem, size = 0x400, scoped, tag = 'output window, operand 0, single buffered']
    %8 = vsyncpa [#allocation5], 0
    %s9 = scalar_lea.sflag [#allocation5], 1
    %10 = vsyncpa %s9, 0
    %11 = vsyncpa [#allocation6], 0
    loop: start=0, step=1, limit=4
    $region2: #{tpu_custom_call.1} parent=1 // loop_pre_header
      _
    $region3: #{tpu_custom_call.1} parent=1 // loop_header
      %s13 = sphi 0, %s17
      %p14 = scmp.ge.s32.totalorder %s13, 4
      %s20 = sphi 0, %s32
      %s21 = sphi 0, %s28
      %s22 = sphi 0, %s20
      %s23 = sphi 0, %s21
      %s24 = sphi 0, %s22
      %s25 = sphi 0, %s23
      %s37 = sphi 0, %s39
      %s40 = sphi 0, %s37
      %s41 = sphi 0, %s40
      %s57 = sphi 0, %s41
      %s61 = sphi 0, %s61
      %s63 = sphi 0, %s61
      %s64 = sphi 0, %s63
      %s78 = sphi 0, %s64
      %s82 = sphi 0, %s82
      %s84 = sphi 0, %s82
      %s85 = sphi 0, %s84
      %s99 = sphi 0, %s85
      %s105 = sphi 0, %s107
      %s108 = sphi 0, %s105
      %s109 = sphi 0, %s108
      %s125 = sphi 0, %s109
    $region4: #{tpu_custom_call.1} parent=1 // loop_header_branch
      %16 = sbr.rel (%p14) target = $region8
    $region5: #{tpu_custom_call.1} parent=1 // loop_body
      %s18 = ssub.s32 %s13, 1
      %s19 = ssub.s32 %s13, 2
      %s26 = sadd.s32 1, %s21
      %p27 = scmp.ge.s32.totalorder %s26, 2
      %s28 = scalar_select %p27, 0, %s26
      %s29 = sadd.s32 1, %s20
      %s30 = scalar_select %p27, %s29, %s20
      %p31 = scmp.ge.s32.totalorder %s30, 1
      %s32 = scalar_select %p31, 0, %s30
      %s33 = ssub.s32 %s20, %s32
      %s34 = ssub.s32 %s21, %s28
      %s35 = sor.u32 %s33, %s34
      %p36 = scmp.eq.s32.totalorder %s35, 0
      %s38 = sadd.s32 %s37, 1
      %s39 = scalar_select %p36, %s37, %s38
      %p42 = pneg %p36
      %p43 = scmp.eq.s32.totalorder %s13, 1
      %p44 = por %p42, %p43
      %p45 = scmp.ne.s32.totalorder %s37, %s40
      %p46 = scmp.eq.s32.totalorder %s13, 0
      %p47 = por %p45, %p46
      %p48 = scmp.ne.s32.totalorder %s37, %s40
      %p49 = scmp.eq.s32.totalorder %s18, 1
      %p50 = por %p48, %p49
      %p51 = scmp.ne.s32.totalorder %s40, %s41
      %p52 = scmp.eq.s32.totalorder %s18, 0
      %p53 = por %p51, %p52
      %p54 = scmp.ne.s32.totalorder %s40, %s41
      %p55 = scmp.eq.s32.totalorder %s19, 1
      %p56 = por %p54, %p55
      %p58 = scmp.ne.s32.totalorder %s41, %s57
      %p59 = scmp.eq.s32.totalorder %s19, 0
      %p60 = por %p58, %p59
      %s62 = sadd.s32 %s61, 1
      %p65 = scmp.eq.s32.totalorder %s13, 1
      %p66 = scmp.ne.s32.totalorder %s61, %s63
      %p67 = scmp.eq.s32.totalorder %s13, 0
      %p68 = por %p66, %p67
      %p69 = scmp.ne.s32.totalorder %s61, %s63
      %p70 = scmp.eq.s32.totalorder %s18, 1
      %p71 = por %p69, %p70
      %p72 = scmp.ne.s32.totalorder %s63, %s64
      %p73 = scmp.eq.s32.totalorder %s18, 0
      %p74 = por %p72, %p73
      %p75 = scmp.ne.s32.totalorder %s63, %s64
      %p76 = scmp.eq.s32.totalorder %s19, 1
      %p77 = por %p75, %p76
      %p79 = scmp.ne.s32.totalorder %s64, %s78
      %p80 = scmp.eq.s32.totalorder %s19, 0
      %p81 = por %p79, %p80
      %s83 = sadd.s32 %s82, 1
      %p86 = scmp.eq.s32.totalorder %s13, 1
      %p87 = scmp.ne.s32.totalorder %s82, %s84
      %p88 = scmp.eq.s32.totalorder %s13, 0
      %p89 = por %p87, %p88
      %p90 = scmp.ne.s32.totalorder %s82, %s84
      %p91 = scmp.eq.s32.totalorder %s18, 1
      %p92 = por %p90, %p91
      %p93 = scmp.ne.s32.totalorder %s84, %s85
      %p94 = scmp.eq.s32.totalorder %s18, 0
      %p95 = por %p93, %p94
      %p96 = scmp.ne.s32.totalorder %s84, %s85
      %p97 = scmp.eq.s32.totalorder %s19, 1
      %p98 = por %p96, %p97
      %p100 = scmp.ne.s32.totalorder %s85, %s99
      %p101 = scmp.eq.s32.totalorder %s19, 0
      %p102 = por %p100, %p101
      %s103 = ssub.s32 %s20, %s32
      %p104 = scmp.eq.s32.totalorder %s103, 0
      %s106 = sadd.s32 %s105, 1
      %s107 = scalar_select %p104, %s105, %s106
      %p110 = pneg %p104
      %p111 = scmp.eq.s32.totalorder %s13, 1
      %p112 = por %p110, %p111
      %p113 = scmp.ne.s32.totalorder %s105, %s108
      %p114 = scmp.eq.s32.totalorder %s13, 0
      %p115 = por %p113, %p114
      %p116 = scmp.ne.s32.totalorder %s105, %s108
      %p117 = scmp.eq.s32.totalorder %s18, 1
      %p118 = por %p116, %p117
      %p119 = scmp.ne.s32.totalorder %s108, %s109
      %p120 = scmp.eq.s32.totalorder %s18, 0
      %p121 = por %p119, %p120
      %p122 = scmp.ne.s32.totalorder %s108, %s109
      %p123 = scmp.eq.s32.totalorder %s19, 1
      %p124 = por %p122, %p123
      %p126 = scmp.ne.s32.totalorder %s109, %s125
      %p127 = scmp.eq.s32.totalorder %s19, 0
      %p128 = por %p126, %p127
      %p129 = scmp.le.s32.totalorder 1, %s13
      %p130 = scmp.lt.s32.totalorder %s13, 3
      %p131 = pnand %p129, %p130
      %p132 = pneg %p131
      // Predicated region
      $region9: #{tpu_custom_call.1} parent=5 // pred_check
        _
      $region10: #{tpu_custom_call.1} parent=5 // pred_check_branch
        %134 = sbr.rel (%p131) target = $region12
      $region11: #{tpu_custom_call.1} parent=5 // pred_region
        %s135 = ssub.s32 %s13, 1
        // Predicated region
        $region13: #{tpu_custom_call.1} parent=11 // pred_check
          %p136 = pneg %p74
        $region14: #{tpu_custom_call.1} parent=11 // pred_check_branch
          %138 = sbr.rel (%p136) target = $region16
        $region15: #{tpu_custom_call.1} parent=11 // pred_region
          _
        $region16: #{tpu_custom_call.1} parent=11 // pred_fallthru
          _
        // Predicated region
        $region17: #{tpu_custom_call.1} parent=11 // pred_check
          %p139 = pneg %p95
        $region18: #{tpu_custom_call.1} parent=11 // pred_check_branch
          %141 = sbr.rel (%p139) target = $region20
        $region19: #{tpu_custom_call.1} parent=11 // pred_region
          _
        $region20: #{tpu_custom_call.1} parent=11 // pred_fallthru
          _
      $region12: #{tpu_custom_call.1} parent=5 // pred_fallthru
        _
      %p142 = scmp.lt.s32.totalorder %s13, 2
      // Predicated region
      $region21: #{tpu_custom_call.1} parent=5 // pred_check
        %p143 = pneg %p142
      $region22: #{tpu_custom_call.1} parent=5 // pred_check_branch
        %145 = sbr.rel (%p143) target = $region24
      $region23: #{tpu_custom_call.1} parent=5 // pred_region
        // Predicated region
        $region25: #{tpu_custom_call.1} parent=23 // pred_check
          %p146 = pneg %p47
        $region26: #{tpu_custom_call.1} parent=23 // pred_check_branch
          %148 = sbr.rel (%p146) target = $region28
        $region27: #{tpu_custom_call.1} parent=23 // pred_region
          %s149 = sand.u32 %s37, 1
          %s150 = scalar_lea.sflag [#allocation5], %s149
          %s151 = sand.u32 %s37, 1
          %s152 = smul.addr %s151, 64
          %s153 = scalar_lea.vmem [#allocation4], %s152
          %s154 = smul.u32 2, %s20
          %156 = vsyncadd %s150, 0
          %s157 = smul.addr %s154, 8
          %s158 = sadd.s32 %s21, %s157
          %s159 = smul.addr %s158, 8
          %s160 = scalar_lea.hbm %s0, %s159
          %s161 = sshll.u32 %s160, 4
          %s162 = int_to_ptr.hbm [resolvable:$true] %s161
          %s163 = sshll.u32 %s153, 4
          %s164 = int_to_ptr.vmem [resolvable:$true] %s163
          %169 = dma.hbm_to_vmem [thread:$0]  %s162, 1024, %s164, %s150, 256, 128, 8
        $region28: #{tpu_custom_call.1} parent=23 // pred_fallthru
          _
      $region24: #{tpu_custom_call.1} parent=5 // pred_fallthru
        _
      %p170 = scmp.le.s32.totalorder 1, %s13
      %p171 = scmp.lt.s32.totalorder %s13, 3
      %p172 = pnand %p170, %p171
      %p173 = pneg %p172
      // Predicated region
      $region29: #{tpu_custom_call.1} parent=5 // pred_check
        _
      $region30: #{tpu_custom_call.1} parent=5 // pred_check_branch
        %175 = sbr.rel (%p172) target = $region32
      $region31: #{tpu_custom_call.1} parent=5 // pred_region
        %s176 = ssub.s32 %s13, 1
        %s177 = sand.u32 %s40, 1
        %s178 = scalar_lea.sflag [#allocation5], %s177
        %s179 = sand.u32 %s40, 1
        %s180 = smul.addr %s179, 64
        %s181 = scalar_lea.vmem [#allocation4], %s180
        // Predicated region
        $region33: #{tpu_custom_call.1} parent=31 // pred_check
          %p182 = pneg %p53
        $region34: #{tpu_custom_call.1} parent=31 // pred_check_branch
          %184 = sbr.rel (%p182) target = $region36
        $region35: #{tpu_custom_call.1} parent=31 // pred_region
          %186 = dma.done %s178, 1024
        $region36: #{tpu_custom_call.1} parent=31 // pred_fallthru
          _
        %s187 = sand.u32 %s40, 1
        %s188 = scalar_lea.sflag [#allocation5], %s187
        %s189 = sand.u32 %s40, 1
        %s190 = smul.addr %s189, 64
        %s191 = scalar_lea.vmem [#allocation4], %s190
        %p192 = pneg %p53
        %p193 = pneg %p50
        %p194 = pneg %p74
        %p195 = pneg %p71
        %p196 = pneg %p95
        %p197 = pneg %p92
        %p198 = pneg %p121
        %p199 = pneg %p118
        %s200 = smul.u32 2, %s22
        %p201 = scmp.eq.s32.totalorder %s23, 0
        // Predicated region
        $region37: #{tpu_custom_call.1} parent=31 // pred_check
          %p202 = pneg %p201
        $region38: #{tpu_custom_call.1} parent=31 // pred_check_branch
          %204 = sbr.rel (%p202) target = $region40
        $region39: #{tpu_custom_call.1} parent=31 // pred_region
          %vm205 = vcmask 254976
          %206 = vst.msk [vmem:[#allocation2] sm:$0x3] %vm205, 0.0
          %207 = vst.msk [vmem:[#allocation3] sm:$0x3] %vm205, -inf
        $region40: #{tpu_custom_call.1} parent=31 // pred_fallthru
          _
        %v208 = vld [vmem:[%s181] sm:$0xff]
        %v209 = vld [vmem:[%s181 + $0x8] sm:$0xff]
        %v210 = vld [vmem:[%s181 + $0x10] sm:$0xff]
        %v211 = vld [vmem:[%s181 + $0x18] sm:$0xff]
        %v212 = vld [vmem:[%s181 + $0x20] sm:$0xff]
        %v213 = vld [vmem:[%s181 + $0x28] sm:$0xff]
        %v214 = vld [vmem:[%s181 + $0x30] sm:$0xff]
        %v215 = vld [vmem:[%s181 + $0x38] sm:$0xff]
        %v216 = vld [vmem:[#allocation2] sm:$0x3]
        %217 = vadd.xlane.f32.xlu0 %v208
        %v218 = vpop.xlane.xlu0 %217
        %219 = vadd.xlane.f32.xlu0 %v209
        %v220 = vpop.xlane.xlu0 %219
        %221 = vadd.xlane.f32.xlu0 %v210
        %v222 = vpop.xlane.xlu0 %221
        %223 = vadd.xlane.f32.xlu0 %v211
        %v224 = vpop.xlane.xlu0 %223
        %225 = vadd.xlane.f32.xlu0 %v212
        %v226 = vpop.xlane.xlu0 %225
        %227 = vadd.xlane.f32.xlu0 %v213
        %v228 = vpop.xlane.xlu0 %227
        %229 = vadd.xlane.f32.xlu0 %v214
        %v230 = vpop.xlane.xlu0 %229
        %231 = vadd.xlane.f32.xlu0 %v215
        %v232 = vpop.xlane.xlu0 %231
        %v241 = vlaneseq
        %v242 = vand.u32 %v241, 127
        %v243 = vperm.slane %v218, %v242
        %v244 = vadd.s32 %v242, 4294967288
        %v245 = vperm.slane %v220, %v244
        %vm246 = vcmask 130112
        %v247 = vsel %vm246, %v245, %v243
        %v248 = vadd.s32 %v242, 4294967280
        %v249 = vperm.slane %v222, %v248
        %vm250 = vcmask 195712
        %v251 = vsel %vm250, %v249, %v247
        %v252 = vadd.s32 %v242, 4294967272
        %v253 = vperm.slane %v224, %v252
        %vm254 = vcmask 261312
        %v255 = vsel %vm254, %v253, %v251
        %v256 = vperm.slane %v226, %v242
        %v257 = vperm.slane %v228, %v244
        %v258 = vsel %vm246, %v257, %v256
        %v259 = vperm.slane %v230, %v248
        %v260 = vsel %vm250, %v259, %v258
        %v261 = vperm.slane %v232, %v252
        %v262 = vsel %vm254, %v261, %v260
        %vm263 = vcmask 1041409
        %v264 = vsel %vm263, %v262, %v255
        %v266 = vadd.f32 %v216, %v264
        %vm267 = vcmask 254976
        %268 = vst.msk [vmem:[#allocation2] sm:$0x3] %vm267, %v266
        %v269 = vld [vmem:[#allocation3] sm:$0x3]
        %270 = vmax.xlane.f32.xlu0 %v208
        %v271 = vpop.xlane.xlu0 %270
        %272 = vmax.xlane.f32.xlu0 %v209
        %v273 = vpop.xlane.xlu0 %272
        %274 = vmax.xlane.f32.xlu0 %v210
        %v275 = vpop.xlane.xlu0 %274
        %276 = vmax.xlane.f32.xlu0 %v211
        %v277 = vpop.xlane.xlu0 %276
        %278 = vmax.xlane.f32.xlu0 %v212
        %v279 = vpop.xlane.xlu0 %278
        %280 = vmax.xlane.f32.xlu0 %v213
        %v281 = vpop.xlane.xlu0 %280
        %282 = vmax.xlane.f32.xlu0 %v214
        %v283 = vpop.xlane.xlu0 %282
        %284 = vmax.xlane.f32.xlu0 %v215
        %v285 = vpop.xlane.xlu0 %284
        %v294 = vperm.slane %v271, %v242
        %v295 = vperm.slane %v273, %v244
        %v296 = vsel %vm246, %v295, %v294
        %v297 = vperm.slane %v275, %v248
        %v298 = vsel %vm250, %v297, %v296
        %v299 = vperm.slane %v277, %v252
        %v300 = vsel %vm254, %v299, %v298
        %v301 = vperm.slane %v279, %v242
        %v302 = vperm.slane %v281, %v244
        %v303 = vsel %vm246, %v302, %v301
        %v304 = vperm.slane %v283, %v248
        %v305 = vsel %vm250, %v304, %v303
        %v306 = vperm.slane %v285, %v252
        %v307 = vsel %vm254, %v306, %v305
        %v308 = vsel %vm263, %v307, %v300
        %v310 = vmax.f32 %v269, %v308
        %311 = vst.msk [vmem:[#allocation3] sm:$0x3] %vm267, %v310
        %p312 = scmp.eq.s32.totalorder %s23, 1
        // Predicated region
        $region41: #{tpu_custom_call.1} parent=31 // pred_check
          %p313 = pneg %p312
        $region42: #{tpu_custom_call.1} parent=31 // pred_check_branch
          %315 = sbr.rel (%p313) target = $region44
        $region43: #{tpu_custom_call.1} parent=31 // pred_region
          %v316 = vld [vmem:[#allocation2] sm:$0x3]
          %v317 = vmul.f32 %v316, 0.00390625
          %v318 = vld [vmem:[#allocation3] sm:$0x3]
          %v320 = vrot.slane %v318, 6
          %vm322 = vcmask 1041408
          %v323 = vsel %vm322, %v317, %v320
          %v324 = vld [vmem:[%s1] sm:$0xff]
          %v325 = vld [vmem:[%s1 + $0x8] sm:$0xff]
          %v326 = vld [vmem:[%s1 + $0x10] sm:$0xff]
          %v327 = vld [vmem:[%s1 + $0x18] sm:$0xff]
          %vm328 = vcmask 261120
          %v330 = vsel %vm328, %v323, 0
          %332 = vmatpush.msra.mxu0 0.0
          %333 = vmatpush.msra.mxu0 0.0
          %334 = vmatpush.msra.mxu0 0.0
          %335 = vmatpush.msra.mxu0 0.0
          %336 = vmatpush.msra.mxu0 0.0
          %337 = vmatpush.msra.mxu0 0.0
          %338 = vmatpush.msra.mxu0 0.0
          %339 = vmatpush.msra.mxu0 0.0
          %340 = vmatpush.msra.mxu0 0.0
          %341 = vmatpush.msra.mxu0 0.0
          %342 = vmatpush.msra.mxu0 0.0
          %343 = vmatpush.msra.mxu0 0.0
          %344 = vmatpush.msra.mxu0 %v327
          %345 = vmatpush.msra.mxu0 %v326
          %346 = vmatpush.msra.mxu0 %v325
          %347 = vmatpush.msra.mxu0 %v324
          %348 = vmatmul.f32.gmra.mxu0 %v330
          %v349 = vpop.f32.mrf.mxu0
          %v350 = vadd.f32 0.0, %v349
          %351 = vdwg.mxu0
          %v352 = vmul.f32 %v350, 0.5
          %v353 = vmul.f32 %v350, 0.044715
          %v354 = vmul.f32 %v353, %v350
          %v355 = vmul.f32 %v354, %v350
          %v356 = vadd.f32 %v350, %v355
          %v357 = vmul.f32 %v356, 0.7978846
          %v358 = vtanh.pop %v357
          %v359 = vadd.f32 %v358, 1.0
          %v360 = vmul.f32 %v352, %v359
          %v361 = vld [vmem:[%s2] sm:$0x3]
          %vm362 = vcmask 15360
          %v364 = vsel %vm362, %v360, 0
          %v367 = vsel %vm322, %v361, 0
          %369 = vmatpush.msra.mxu0 0.0
          %370 = vmatpush.msra.mxu0 0.0
          %371 = vmatpush.msra.mxu0 0.0
          %372 = vmatpush.msra.mxu0 0.0
          %373 = vmatpush.msra.mxu0 0.0
          %374 = vmatpush.msra.mxu0 0.0
          %375 = vmatpush.msra.mxu0 0.0
          %376 = vmatpush.msra.mxu0 0.0
          %377 = vmatpush.msra.mxu0 0.0
          %378 = vmatpush.msra.mxu0 0.0
          %379 = vmatpush.msra.mxu0 0.0
          %380 = vmatpush.msra.mxu0 0.0
          %381 = vmatpush.msra.mxu0 0.0
          %382 = vmatpush.msra.mxu0 0.0
          %383 = vmatpush.msra.mxu0 0.0
          %384 = vmatpush.msra.mxu0 %v367
          %385 = vmatmul.f32.gmra.mxu0 %v364
          %v386 = vpop.f32.mrf.mxu0
          %v387 = vadd.f32 0.0, %v386
          %388 = vdwg.mxu0
          %v389 = vmul.f32 %v387, 2.0
          %v391 = vrot.slane %v387, 2
          %v393 = vadd.f32 %v389, %v391
          %v394 = vxor.u32 %v393, 2147483648
          %v395 = vmul.f32 %v394, 1.442695
          %v396 = vpow.pop %v395
          %v397 = vadd.f32 %v396, 1.0
          %v398 = vrcp.pop %v397
          %v399 = vmul.f32 %v397, %v398
          %v400 = vsub.f32 1.0, %v399
          %v401 = vmul.f32 %v398, %v400
          %v402 = vadd.f32 %v398, %v401
          %vm403 = vweird.f32 %v397
          %vm404 = vweird.f32 %v398
          %vm405 = vmor %vm403, %vm404
          %v406 = vsel %vm405, %v398, %v402
          %v407 = vand.u32 2147483647, %v397
          %vm408 = vcmp.eq.f32.partialorder %v407, 8.507059e+37
          %v409 = vand.u32 %v397, 2147483648
          %v410 = vor.u32 1.1754944e-38, %v409
          %v411 = vsel %vm408, %v410, %v406
          %v412 = vmul.f32 1.0, %v411
          %413 = vst.msk [vmem:[#allocation7] sm:$0x3] %vm267, %v412
        $region44: #{tpu_custom_call.1} parent=31 // pred_fallthru
          _
        // Predicated region
        $region45: #{tpu_custom_call.1} parent=31 // pred_check
          %p414 = pneg %p118
        $region46: #{tpu_custom_call.1} parent=31 // pred_check_branch
          %416 = sbr.rel (%p414) target = $region48
        $region47: #{tpu_custom_call.1} parent=31 // pred_region
          %418 = vsyncadd [#allocation6], 0
          %s419 = smul.addr %s22, 2
          %s420 = scalar_lea.hbm %s3, %s419
          %s422 = sshll.u32 [#allocation7], 4
          %s423 = int_to_ptr.vmem [resolvable:$true] %s422
          %s424 = sshll.u32 %s420, 4
          %s425 = int_to_ptr.hbm [resolvable:$true] %s424
          %427 = dma.vmem_to_hbm [thread:$0]  %s423, 32, %s425, [#allocation6]
        $region48: #{tpu_custom_call.1} parent=31 // pred_fallthru
          _
        // Predicated region
        $region49: #{tpu_custom_call.1} parent=31 // pred_check
          %p428 = pneg %p118
        $region50: #{tpu_custom_call.1} parent=31 // pred_check_branch
          %430 = sbr.rel (%p428) target = $region52
        $region51: #{tpu_custom_call.1} parent=31 // pred_region
          %432 = dma.done [#allocation6], 32
        $region52: #{tpu_custom_call.1} parent=31 // pred_fallthru
          _
      $region32: #{tpu_custom_call.1} parent=5 // pred_fallthru
        _
      %p433 = scmp.le.s32.totalorder 2, %s13
      // Predicated region
      $region53: #{tpu_custom_call.1} parent=5 // pred_check
        %p434 = pneg %p433
      $region54: #{tpu_custom_call.1} parent=5 // pred_check_branch
        %436 = sbr.rel (%p434) target = $region56
      $region55: #{tpu_custom_call.1} parent=5 // pred_region
        %s437 = ssub.s32 %s13, 2
      $region56: #{tpu_custom_call.1} parent=5 // pred_fallthru
        _
    $region6: #{tpu_custom_call.1} parent=1 // loop_footer
      %s17 = sadd.s32 1, %s13
    $region7: #{tpu_custom_call.1} parent=1 // loop_footer_branch
      %12 = sbr.rel target = $region3
    $region8: #{tpu_custom_call.1} parent=1 // loop_exit
      _
    %438 = vsyncpa [#allocation5], 1
    %s439 = scalar_lea.sflag [#allocation5], 1
    %440 = vsyncpa %s439, 1
    %441 = vsyncpa [#allocation6], 1
    %s442 = scalar_lea.sflag [#allocation6], 1
    %443 = vsyncpa %s442, 1

</llo_original>
